<compile_context>
chip_gen: v5e
topology: v5e:2x2
jax: 0.10.0
libtpu: 0.0.40
codegen_flags: <defaults>
</compile_context>

<pallas_src>
import functools

import jax
import jax.numpy as jnp
from jax.experimental import pallas as pl
from jax.experimental.pallas import tpu as pltpu

BN_EPS = 1e-5
NORM_EPS = 1e-12
LANE = 128


def _round_up(x, m):
    return ((x + m - 1) // m) * m


def _cdiv(a, b):
    return (a + b - 1) // b


def _vmem_capacity_bytes():
    try:
        return int(pltpu.get_tpu_info().vmem_capacity_bytes)
    except Exception:
        return 64 << 20                       # conservative fallback (v7x-sized)


def _choose_tile_n(dp, hp, budget_bytes):
    """Largest row tile (multiple of 16) whose working set fits the budget."""
    weight_bytes = 2 * dp * hp * 2            # W1 + W2, bf16, single copy (Buffered(1))
    for t in (2048, 1024, 512, 256, 128, 64, 32, 16):
        per_tile = (2 * t * dp * 2            # x tile, double-buffered bf16
                    + 2 * t * dp * 4          # out tile, double-buffered f32
                    + 4 * t * hp * 4)         # h / activations / temporaries (f32)
        if weight_bytes + per_tile <= budget_bytes:
            return t
    return 16


def _vmem_limit_bytes(tile_n, dp, hp, cap):
    weights = 2 * dp * hp * 2
    tiles = 2 * tile_n * dp * 2 + 2 * tile_n * dp * 4
    working = 4 * tile_n * hp * 4
    vectors = 8 * max(dp, hp) * 4
    want = int(1.4 * (weights + tiles + working + vectors)) + (8 << 20)
    return int(min(want, int(cap * 0.9)))


def _const_spec(shape, single_buffered=False):
    """BlockSpec for a grid-invariant (VMEM-resident) operand."""
    idx = lambda *_: (0,) * len(shape)
    if single_buffered:
        try:   # grid-invariant: one VMEM copy is enough
            return pl.BlockSpec(shape, idx, pipeline_mode=pl.Buffered(1))
        except Exception:                     # fall back if kwarg unsupported
            pass
    return pl.BlockSpec(shape, idx)


def _pad2(a, rows, cols):
    if a.shape == (rows, cols):
        return a
    return jnp.zeros((rows, cols), a.dtype).at[:a.shape[0], :a.shape[1]].set(a)


def _pad_vec(v, cols):
    v = v.astype(jnp.float32)
    if v.shape[0] == cols:
        return v.reshape(1, cols)
    return jnp.zeros((1, cols), jnp.float32).at[0, :v.shape[0]].set(v)


def _pad_x(x2, n_pad, dp):
    n, d = x2.shape
    xb = x2.astype(jnp.bfloat16)              # cast fused into the pad
    if n == n_pad and d == dp:
        return xb
    return jnp.zeros((n_pad, dp), jnp.bfloat16).at[:n, :d].set(xb)


# ---------------------------------------------------------------------------
# Fused fast path: whole problem resident in VMEM (single grid step).
# ---------------------------------------------------------------------------
def _fused_kernel(x_ref, w1_ref, b1_ref, gamma_ref, beta_ref, w2_ref, b2_ref,
                  o_ref, *, n_true, n_pad):
    h = jnp.dot(x_ref[...], w1_ref[...],
                preferred_element_type=jnp.float32) + b1_ref[...]
    s = jnp.sum(h, axis=0, keepdims=True)
    sq = jnp.sum(h * h, axis=0, keepdims=True)
    if n_pad != n_true:
        # Padded x rows are exact zeros -> their h rows are exactly b1.
        extra = float(n_pad - n_true)
        b = b1_ref[...]
        s = s - extra * b
        sq = sq - extra * b * b
    inv_n = 1.0 / float(n_true)
    mean = s * inv_n
    var = jnp.maximum(sq * inv_n - mean * mean, 0.0)       # biased variance
    scale = gamma_ref[...] * jax.lax.rsqrt(var + BN_EPS)   # folded BN affine
    shift = beta_ref[...] - mean * scale
    a = jnp.maximum(h * scale + shift, 0.0)                # BN + ReLU
    y = jnp.dot(a.astype(jnp.bfloat16), w2_ref[...],
                preferred_element_type=jnp.float32) + b2_ref[...]
    nrm = jnp.sum(y * y, axis=1, keepdims=True)
    o_ref[...] = y * jax.lax.rsqrt(jnp.maximum(nrm, NORM_EPS * NORM_EPS))


# ---------------------------------------------------------------------------
# Pass 1: per-shard partial sums of h and h^2 (grid = (shards, row tiles)).
# ---------------------------------------------------------------------------
def _stats_kernel(x_ref, w1_ref, b1_ref, o_ref):
    @pl.when(pl.program_id(1) == 0)
    def _init():
        o_ref[...] = jnp.zeros_like(o_ref)

    h = jnp.dot(x_ref[...], w1_ref[...],
                preferred_element_type=jnp.float32) + b1_ref[...]
    o_ref[0:1, :] += jnp.sum(h, axis=0, keepdims=True)
    o_ref[1:2, :] += jnp.sum(h * h, axis=0, keepdims=True)


# ---------------------------------------------------------------------------
# Pass 2: recompute h per tile, BN(scale/shift) + ReLU + Linear2 + normalize.
# ---------------------------------------------------------------------------
def _apply_kernel(x_ref, w1_ref, b1_ref, ss_ref, w2_ref, b2_ref, o_ref):
    h = jnp.dot(x_ref[...], w1_ref[...],
                preferred_element_type=jnp.float32) + b1_ref[...]
    a = jnp.maximum(h * ss_ref[0:1, :] + ss_ref[1:2, :], 0.0)       # BN + ReLU
    y = jnp.dot(a.astype(jnp.bfloat16), w2_ref[...],
                preferred_element_type=jnp.float32) + b2_ref[...]
    nrm = jnp.sum(y * y, axis=1, keepdims=True)
    o_ref[...] = y * jax.lax.rsqrt(jnp.maximum(nrm, NORM_EPS * NORM_EPS))


def pchead_forward(x, params, *, tile_n=None, force_two_pass=False):
    """x: (..., D). Returns (prod(leading), D) L2-normalized rows (f32)."""
    w1, b1, gamma, beta, w2, b2 = params      # PyTorch layout: weight is (out, in)
    d = x.shape[-1]
    h_dim = 2 * d
    dp = _round_up(d, LANE)
    hp = _round_up(h_dim, LANE)

    x2 = x.reshape(-1, d)
    n = x2.shape[0]

    cap = _vmem_capacity_bytes()
    budget = int(cap * 0.70)                  # generation-aware VMEM budget

    # Lane-dense zero padding (padded rows/features contribute exactly 0).
    w1p = _pad2(w1.T.astype(jnp.bfloat16), dp, hp)
    w2p = _pad2(w2.T.astype(jnp.bfloat16), hp, dp)
    b1p = _pad_vec(b1, hp)
    gp = _pad_vec(gamma, hp)
    bp = _pad_vec(beta, hp)
    b2p = _pad_vec(b2, dp)

    weight_bytes = 2 * dp * hp * 2

    # ----------------------- fused single-kernel fast path -------------------
    n16 = _round_up(max(n, 16), 16)
    fused_bytes = (weight_bytes + n16 * dp * 2 + n16 * dp * 4
                   + 3 * n16 * hp * 4 + 8 * (dp + hp) * 4)
    if not force_two_pass and fused_bytes <= budget:
        xp = _pad_x(x2, n16, dp)
        out = pl.pallas_call(
            functools.partial(_fused_kernel, n_true=n, n_pad=n16),
            out_shape=jax.ShapeDtypeStruct((n16, dp), jnp.float32),
            grid_spec=pltpu.PrefetchScalarGridSpec(
                num_scalar_prefetch=0,
                grid=(1,),
                in_specs=[
                    _const_spec((n16, dp)),
                    _const_spec((dp, hp)),
                    _const_spec((1, hp)),
                    _const_spec((1, hp)),
                    _const_spec((1, hp)),
                    _const_spec((hp, dp)),
                    _const_spec((1, dp)),
                ],
                out_specs=_const_spec((n16, dp)),
            ),
            compiler_params=pltpu.CompilerParams(
                dimension_semantics=("arbitrary",),
                vmem_limit_bytes=int(min(1.5 * fused_bytes + (8 << 20), cap * 0.9))),
            cost_estimate=pl.CostEstimate(
                flops=int(4 * n16 * dp * hp + 8 * n16 * hp),
                transcendentals=int(hp + n16),
                bytes_accessed=int(n16 * dp * 6 + 2 * dp * hp * 2 + 8 * hp * 4)),
        )(xp, w1p, b1p, gp, bp, w2p, b2p)
        return out if (n16 == n and dp == d) else out[:n, :d]

    # ----------------------- two-pass streaming path -------------------------
    if tile_n is None:
        tile_n = _choose_tile_n(dp, hp, budget)
    else:
        tile_n = _round_up(max(int(tile_n), 16), 16)
    tile_n = max(16, min(tile_n, _round_up(_cdiv(n, 2), 16)))   # keep >= 2 tiles

    n_tiles = _cdiv(n, tile_n)
    num_shards = 2 if n_tiles >= 2 else 1      # shard pass-1 reduction (v7x: 2 TCs)
    steps = _cdiv(n_tiles, num_shards)
    n_pad = tile_n * num_shards * steps

    xp = _pad_x(x2, n_pad, dp)
    vmem_limit = _vmem_limit_bytes(tile_n, dp, hp, cap)

    # Pass 1: per-shard partial sums of h and h^2 over row tiles.
    stats_raw = pl.pallas_call(
        _stats_kernel,
        out_shape=jax.ShapeDtypeStruct((2, num_shards * hp), jnp.float32),
        grid_spec=pltpu.PrefetchScalarGridSpec(
            num_scalar_prefetch=0,
            grid=(num_shards, steps),
            in_specs=[
                pl.BlockSpec((tile_n, dp), lambda s, i: (s * steps + i, 0)),
                _const_spec((dp, hp), single_buffered=True),    # W1^T (resident)
                _const_spec((1, hp)),                           # b1
            ],
            out_specs=pl.BlockSpec((2, hp), lambda s, i: (0, s)),
        ),
        compiler_params=pltpu.CompilerParams(
            dimension_semantics=("parallel", "arbitrary"),
            vmem_limit_bytes=vmem_limit),
        cost_estimate=pl.CostEstimate(
            flops=int(2 * n_pad * dp * hp + 4 * n_pad * hp),
            transcendentals=0,
            bytes_accessed=int(n_pad * dp * 2 + dp * hp * 2 + 4 * hp * 4)),
    )(xp, w1p, b1p)

    # Combine shard partials, correct analytically for padded rows (h == b1
    # there, exactly), fold BN affine into per-feature scale/shift (O(hp) jnp).
    parts = stats_raw.reshape(2, num_shards, hp).sum(axis=1)
    sum_h, sumsq_h = parts[0], parts[1]
    b1v = b1p[0]
    n_extra = n_pad - n
    if n_extra:
        sum_h = sum_h - float(n_extra) * b1v
        sumsq_h = sumsq_h - float(n_extra) * b1v * b1v
    inv_n = 1.0 / float(n)
    mean = sum_h * inv_n
    var = jnp.maximum(sumsq_h * inv_n - mean * mean, 0.0)   # biased variance
    scale = gp[0] * jax.lax.rsqrt(var + BN_EPS)
    shift = bp[0] - mean * scale
    ss = jnp.stack([scale, shift], axis=0)                  # (2, hp) folded affine

    # Pass 2: BN + ReLU + Linear2 + L2 normalize, tile-parallel over rows.
    out = pl.pallas_call(
        _apply_kernel,
        out_shape=jax.ShapeDtypeStruct((n_pad, dp), jnp.float32),
        grid_spec=pltpu.PrefetchScalarGridSpec(
            num_scalar_prefetch=0,
            grid=(n_pad // tile_n,),
            in_specs=[
                pl.BlockSpec((tile_n, dp), lambda i: (i, 0)),
                _const_spec((dp, hp), single_buffered=True),    # W1^T
                _const_spec((1, hp)),                           # b1
                _const_spec((2, hp)),                           # folded scale/shift
                _const_spec((hp, dp), single_buffered=True),    # W2^T
                _const_spec((1, dp)),                           # b2
            ],
            out_specs=pl.BlockSpec((tile_n, dp), lambda i: (i, 0)),
        ),
        compiler_params=pltpu.CompilerParams(
            dimension_semantics=("parallel",),
            vmem_limit_bytes=vmem_limit),
        cost_estimate=pl.CostEstimate(
            flops=int(4 * n_pad * dp * hp + 8 * n_pad * hp),
            transcendentals=int(n_pad),
            bytes_accessed=int(n_pad * dp * 6 + 2 * dp * hp * 2),
        ),
    )(xp, w1p, b1p, ss, w2p, b2p)
    return out if (n_pad == n and dp == d) else out[:n, :d]


def init_params(key, input_dim):
    """Deterministic params in PyTorch layout: Linear weight is (out, in)."""
    hidden = input_dim * 2
    k1, k2, k3, k4 = jax.random.split(key, 4)
    bound1 = 1.0 / float(input_dim) ** 0.5
    w1 = jax.random.uniform(k1, (hidden, input_dim), jnp.float32, -bound1, bound1)
    b1 = jax.random.uniform(k2, (hidden,), jnp.float32, -bound1, bound1)
    bound2 = 1.0 / float(hidden) ** 0.5
    w2 = jax.random.uniform(k3, (input_dim, hidden), jnp.float32, -bound2, bound2)
    b2 = jax.random.uniform(k4, (input_dim,), jnp.float32, -bound2, bound2)
    gamma = jnp.ones((hidden,), jnp.float32)
    beta = jnp.zeros((hidden,), jnp.float32)
    return (w1, b1, gamma, beta, w2, b2)


def pchead_reference_f32(x, params):
    """Pure f32 reference matching the PyTorch module."""
    w1, b1, gamma, beta, w2, b2 = params
    x2 = x.reshape(-1, x.shape[-1]).astype(jnp.float32)
    h = x2 @ w1.T + b1
    mean = jnp.mean(h, axis=0, keepdims=True)
    var = jnp.mean((h - mean) ** 2, axis=0, keepdims=True)
    h = (h - mean) * jax.lax.rsqrt(var + BN_EPS) * gamma + beta
    h = jnp.maximum(h, 0.0)
    y = h @ w2.T + b2
    norm = jnp.sqrt(jnp.sum(y * y, axis=1, keepdims=True))
    return y / jnp.maximum(norm, NORM_EPS)


def pchead_reference_matched(x, params):
    """Reference matching the kernel's arithmetic (bf16 MXU operands, f32 acc)."""
    w1, b1, gamma, beta, w2, b2 = params
    x2 = x.reshape(-1, x.shape[-1]).astype(jnp.float32)
    h = jnp.dot(x2.astype(jnp.bfloat16), w1.T.astype(jnp.bfloat16),
                preferred_element_type=jnp.float32) + b1
    mean = jnp.mean(h, axis=0, keepdims=True)
    var = jnp.maximum(jnp.mean(h * h, axis=0, keepdims=True) - mean * mean, 0.0)
    scale = gamma * jax.lax.rsqrt(var + BN_EPS)
    shift = beta - mean * scale
    a = jnp.maximum(h * scale + shift, 0.0)
    y = jnp.dot(a.astype(jnp.bfloat16), w2.T.astype(jnp.bfloat16),
                preferred_element_type=jnp.float32) + b2
    sq = jnp.sum(y * y, axis=1, keepdims=True)
    return y * jax.lax.rsqrt(jnp.maximum(sq, NORM_EPS * NORM_EPS))


if __name__ == "__main__":
    key = jax.random.PRNGKey(0)
    kx, kp = jax.random.split(key)

    input_dim = 32          # feature dim D (padded to 128 lanes inside the wrapper)
    batch, seq = 2, 9       # flattened N = 18 rows (exercises row padding/correction)

    x = jax.random.normal(kx, (batch, seq, input_dim), jnp.float32)
    params = init_params(kp, input_dim)

    # Fused single-kernel fast path (default for this small shape).
    out_fused = jax.block_until_ready(pchead_forward(x, params))
    # Two-pass streaming path (forced, to exercise the sharded-stats kernels).
    out_tiled = jax.block_until_ready(
        pchead_forward(x, params, tile_n=16, force_two_pass=True))

    assert out_fused.shape == (batch * seq, input_dim)
    assert out_tiled.shape == (batch * seq, input_dim)

    ref_matched = pchead_reference_matched(x, params)
    assert jnp.allclose(out_fused, ref_matched, atol=5e-3, rtol=5e-3), \
        "fused path mismatch vs matched-precision reference"
    assert jnp.allclose(out_tiled, ref_matched, atol=5e-3, rtol=5e-3), \
        "two-pass path mismatch vs matched-precision reference"

    ref_f32 = pchead_reference_f32(x, params)
    assert jnp.allclose(out_fused, ref_f32, atol=5e-2, rtol=5e-2), \
        "fused path mismatch vs f32 reference"
    assert jnp.allclose(out_tiled, ref_f32, atol=5e-2, rtol=5e-2), \
        "two-pass path mismatch vs f32 reference"

    print("KERNEL_OK")
</pallas_src>

<mosaic_0001>
module attributes {stable_mosaic.version = 11 : i64} {
  func.func @_fused_kernel(%arg0: i32, %arg1: memref<32x128xbf16, #tpu.memory_space<vmem>>, %arg2: memref<128x128xbf16, #tpu.memory_space<vmem>>, %arg3: memref<1x128xf32, #tpu.memory_space<vmem>>, %arg4: memref<1x128xf32, #tpu.memory_space<vmem>>, %arg5: memref<1x128xf32, #tpu.memory_space<vmem>>, %arg6: memref<128x128xbf16, #tpu.memory_space<vmem>>, %arg7: memref<1x128xf32, #tpu.memory_space<vmem>>, %arg8: memref<32x128xf32, #tpu.memory_space<vmem>>) attributes {dimension_semantics = [#tpu.dimension_semantics<arbitrary>], iteration_bounds = array<i64: 1>, scalar_prefetch = 0 : i64, scratch_operands = 0 : i64, tpu.core_type = #tpu.core_type<tc>, window_params = [{pipeline_mode = #tpu.pipeline_mode<synchronous>, transform_indices = @transform_0, window_bounds = array<i64: 32, 128>}, {pipeline_mode = #tpu.pipeline_mode<synchronous>, transform_indices = @transform_1, window_bounds = array<i64: 128, 128>}, {pipeline_mode = #tpu.pipeline_mode<synchronous>, transform_indices = @transform_2, window_bounds = array<i64: 1, 128>}, {pipeline_mode = #tpu.pipeline_mode<synchronous>, transform_indices = @transform_3, window_bounds = array<i64: 1, 128>}, {pipeline_mode = #tpu.pipeline_mode<synchronous>, transform_indices = @transform_4, window_bounds = array<i64: 1, 128>}, {pipeline_mode = #tpu.pipeline_mode<synchronous>, transform_indices = @transform_5, window_bounds = array<i64: 128, 128>}, {pipeline_mode = #tpu.pipeline_mode<synchronous>, transform_indices = @transform_6, window_bounds = array<i64: 1, 128>}, {pipeline_mode = #tpu.pipeline_mode<synchronous>, transform_indices = @transform_7, window_bounds = array<i64: 32, 128>}]} {
    %c0 = arith.constant 0 : index
    %c0_0 = arith.constant 0 : index
    %0 = vector.load %arg1[%c0, %c0_0] : memref<32x128xbf16, #tpu.memory_space<vmem>>, vector<32x128xbf16>
    %c0_1 = arith.constant 0 : index
    %c0_2 = arith.constant 0 : index
    %1 = vector.load %arg2[%c0_1, %c0_2] : memref<128x128xbf16, #tpu.memory_space<vmem>>, vector<128x128xbf16>
    %cst = arith.constant dense<0.000000e+00> : vector<32x128xf32>
    %2 = tpu.matmul %0, %1, %cst {dimension_numbers = #tpu.dot_dimension_numbers<[1], [0], [0], [1], [0, 0, 1, 1], [], []>} : vector<32x128xbf16>, vector<128x128xbf16>, vector<32x128xf32> -> vector<32x128xf32>
    %c0_3 = arith.constant 0 : index
    %c0_4 = arith.constant 0 : index
    %3 = vector.load %arg3[%c0_3, %c0_4] : memref<1x128xf32, #tpu.memory_space<vmem>>, vector<1x128xf32>
    %4 = vector.broadcast %3 : vector<1x128xf32> to vector<32x128xf32>
    %5 = arith.addf %2, %4 : vector<32x128xf32>
    %cst_5 = arith.constant dense<0.000000e+00> : vector<128xf32>
    %6 = vector.multi_reduction <add>, %5, %cst_5 [0] : vector<32x128xf32> to vector<128xf32>
    %7 = vector.shape_cast %6 : vector<128xf32> to vector<1x128xf32>
    %8 = arith.mulf %5, %5 : vector<32x128xf32>
    %cst_6 = arith.constant dense<0.000000e+00> : vector<128xf32>
    %9 = vector.multi_reduction <add>, %8, %cst_6 [0] : vector<32x128xf32> to vector<128xf32>
    %10 = vector.shape_cast %9 : vector<128xf32> to vector<1x128xf32>
    %c0_7 = arith.constant 0 : index
    %c0_8 = arith.constant 0 : index
    %11 = vector.load %arg3[%c0_7, %c0_8] : memref<1x128xf32, #tpu.memory_space<vmem>>, vector<1x128xf32>
    %cst_9 = arith.constant 1.400000e+01 : f32
    %12 = vector.broadcast %cst_9 : f32 to vector<1x128xf32>
    %13 = arith.mulf %12, %11 : vector<1x128xf32>
    %14 = arith.subf %7, %13 : vector<1x128xf32>
    %cst_10 = arith.constant 1.400000e+01 : f32
    %15 = vector.broadcast %cst_10 : f32 to vector<1x128xf32>
    %16 = arith.mulf %15, %11 : vector<1x128xf32>
    %17 = arith.mulf %16, %11 : vector<1x128xf32>
    %18 = arith.subf %10, %17 : vector<1x128xf32>
    %cst_11 = arith.constant 0.055555556 : f32
    %19 = vector.broadcast %cst_11 : f32 to vector<1x128xf32>
    %20 = arith.mulf %14, %19 : vector<1x128xf32>
    %cst_12 = arith.constant 0.055555556 : f32
    %21 = vector.broadcast %cst_12 : f32 to vector<1x128xf32>
    %22 = arith.mulf %18, %21 : vector<1x128xf32>
    %23 = arith.mulf %20, %20 : vector<1x128xf32>
    %24 = arith.subf %22, %23 : vector<1x128xf32>
    %cst_13 = arith.constant 0.000000e+00 : f32
    %25 = vector.broadcast %cst_13 : f32 to vector<1x128xf32>
    %26 = arith.maximumf %24, %25 : vector<1x128xf32>
    %c0_14 = arith.constant 0 : index
    %c0_15 = arith.constant 0 : index
    %27 = vector.load %arg4[%c0_14, %c0_15] : memref<1x128xf32, #tpu.memory_space<vmem>>, vector<1x128xf32>
    %cst_16 = arith.constant 9.99999974E-6 : f32
    %28 = vector.broadcast %cst_16 : f32 to vector<1x128xf32>
    %29 = arith.addf %26, %28 : vector<1x128xf32>
    %30 = math.rsqrt %29 : vector<1x128xf32>
    %31 = arith.mulf %27, %30 : vector<1x128xf32>
    %c0_17 = arith.constant 0 : index
    %c0_18 = arith.constant 0 : index
    %32 = vector.load %arg5[%c0_17, %c0_18] : memref<1x128xf32, #tpu.memory_space<vmem>>, vector<1x128xf32>
    %33 = arith.mulf %20, %31 : vector<1x128xf32>
    %34 = arith.subf %32, %33 : vector<1x128xf32>
    %35 = vector.broadcast %31 : vector<1x128xf32> to vector<32x128xf32>
    %36 = arith.mulf %5, %35 : vector<32x128xf32>
    %37 = vector.broadcast %34 : vector<1x128xf32> to vector<32x128xf32>
    %38 = arith.addf %36, %37 : vector<32x128xf32>
    %cst_19 = arith.constant 0.000000e+00 : f32
    %39 = vector.broadcast %cst_19 : f32 to vector<32x128xf32>
    %40 = arith.maximumf %38, %39 : vector<32x128xf32>
    %41 = arith.truncf %40 : vector<32x128xf32> to vector<32x128xbf16>
    %c0_20 = arith.constant 0 : index
    %c0_21 = arith.constant 0 : index
    %42 = vector.load %arg6[%c0_20, %c0_21] : memref<128x128xbf16, #tpu.memory_space<vmem>>, vector<128x128xbf16>
    %cst_22 = arith.constant dense<0.000000e+00> : vector<32x128xf32>
    %43 = tpu.matmul %41, %42, %cst_22 {dimension_numbers = #tpu.dot_dimension_numbers<[1], [0], [0], [1], [0, 0, 1, 1], [], []>} : vector<32x128xbf16>, vector<128x128xbf16>, vector<32x128xf32> -> vector<32x128xf32>
    %c0_23 = arith.constant 0 : index
    %c0_24 = arith.constant 0 : index
    %44 = vector.load %arg7[%c0_23, %c0_24] : memref<1x128xf32, #tpu.memory_space<vmem>>, vector<1x128xf32>
    %45 = vector.broadcast %44 : vector<1x128xf32> to vector<32x128xf32>
    %46 = arith.addf %43, %45 : vector<32x128xf32>
    %47 = arith.mulf %46, %46 : vector<32x128xf32>
    %cst_25 = arith.constant dense<0.000000e+00> : vector<32xf32>
    %48 = vector.multi_reduction <add>, %47, %cst_25 [1] : vector<32x128xf32> to vector<32xf32>
    %49 = vector.shape_cast %48 : vector<32xf32> to vector<32x1xf32>
    %cst_26 = arith.constant 1.000000e-24 : f32
    %50 = vector.broadcast %cst_26 : f32 to vector<32x1xf32>
    %51 = arith.maximumf %49, %50 : vector<32x1xf32>
    %52 = math.rsqrt %51 : vector<32x1xf32>
    %53 = vector.broadcast %52 : vector<32x1xf32> to vector<32x128xf32>
    %54 = arith.mulf %46, %53 : vector<32x128xf32>
    %c0_27 = arith.constant 0 : index
    %c0_28 = arith.constant 0 : index
    %55 = vector.load %arg8[%c0_27, %c0_28] : memref<32x128xf32, #tpu.memory_space<vmem>>, vector<32x128xf32>
    tpu.vector_store %arg8[%c0_27, %c0_28], %54 {strides = array<i32>} : memref<32x128xf32, #tpu.memory_space<vmem>>, vector<32x128xf32>,
    return
  }
  func.func @transform_0(%arg0: i32) -> (i32, i32) {
    %c0_i32 = arith.constant 0 : i32
    %c0_i32_0 = arith.constant 0 : i32
    %c0_i32_1 = arith.constant 0 : i32
    return %c0_i32, %c0_i32_0 : i32, i32
  }
  func.func @transform_1(%arg0: i32) -> (i32, i32) {
    %c0_i32 = arith.constant 0 : i32
    %c0_i32_0 = arith.constant 0 : i32
    %c0_i32_1 = arith.constant 0 : i32
    return %c0_i32, %c0_i32_0 : i32, i32
  }
  func.func @transform_2(%arg0: i32) -> (i32, i32) {
    %c0_i32 = arith.constant 0 : i32
    %c0_i32_0 = arith.constant 0 : i32
    %c0_i32_1 = arith.constant 0 : i32
    return %c0_i32, %c0_i32_0 : i32, i32
  }
  func.func @transform_3(%arg0: i32) -> (i32, i32) {
    %c0_i32 = arith.constant 0 : i32
    %c0_i32_0 = arith.constant 0 : i32
    %c0_i32_1 = arith.constant 0 : i32
    return %c0_i32, %c0_i32_0 : i32, i32
  }
  func.func @transform_4(%arg0: i32) -> (i32, i32) {
    %c0_i32 = arith.constant 0 : i32
    %c0_i32_0 = arith.constant 0 : i32
    %c0_i32_1 = arith.constant 0 : i32
    return %c0_i32, %c0_i32_0 : i32, i32
  }
  func.func @transform_5(%arg0: i32) -> (i32, i32) {
    %c0_i32 = arith.constant 0 : i32
    %c0_i32_0 = arith.constant 0 : i32
    %c0_i32_1 = arith.constant 0 : i32
    return %c0_i32, %c0_i32_0 : i32, i32
  }
  func.func @transform_6(%arg0: i32) -> (i32, i32) {
    %c0_i32 = arith.constant 0 : i32
    %c0_i32_0 = arith.constant 0 : i32
    %c0_i32_1 = arith.constant 0 : i32
    return %c0_i32, %c0_i32_0 : i32, i32
  }
  func.func @transform_7(%arg0: i32) -> (i32, i32) {
    %c0_i32 = arith.constant 0 : i32
    %c0_i32_0 = arith.constant 0 : i32
    %c0_i32_1 = arith.constant 0 : i32
    return %c0_i32, %c0_i32_0 : i32, i32
  }
}

</mosaic_0001>

<llo_original>
// kernel: tpu_custom_call.1
$region0: #{tpu_custom_call.1}
  #allocation0 [shape = 'u32[]', space=smem, size = 0x4, offset = 0x4, fixed_abs, tag = 'smem constant byte address 0x4 - core index']
  #allocation1 [shape = 'u32[72,128]{1,0:T(1,128)}', space=vmem, size = 0x9000, scoped, tag = 'internal scratch']
  %s0 = inlined_call_operand.hbm [shape: bf16[32,128], index: 0, kind: input, shape index: {}]
  %s1 = inlined_call_operand.hbm [shape: bf16[128,128], index: 1, kind: input, shape index: {}]
  %s2 = inlined_call_operand.vmem [shape: f32[1,128], index: 2, kind: input, shape index: {}]
  %s3 = inlined_call_operand.vmem [shape: f32[1,128], index: 3, kind: input, shape index: {}]
  %s4 = inlined_call_operand.vmem [shape: f32[1,128], index: 4, kind: input, shape index: {}]
  %s5 = inlined_call_operand.hbm [shape: bf16[128,128], index: 5, kind: input, shape index: {}]
  %s6 = inlined_call_operand.vmem [shape: f32[1,128], index: 6, kind: input, shape index: {}]
  %s7 = inlined_call_operand.hbm [shape: f32[32,128], index: 7, kind: output, shape index: {}]
  %s8 = sld [smem:[#allocation0]]
  $region50: #{tpu_custom_call.1} parent=0
    _
  %s10 = ssub.s32 1, %s8
  %s11 = scalar_select 0, %s10, %s8
  $region1: #{tpu_custom_call.1} parent=0
    #allocation2 [shape = 'u8[8192]{0}', space=vmem, size = 0x2000, scoped, tag = 'input window, operand 0, single buffered']
    #allocation3 [shape = 's32[1]{0}', space=sflag, size = 0x4, scoped, tag = 'scoped memory for tpu_custom_call.1']
    #allocation4 [shape = 's32[1]{0}', space=sflag, size = 0x4, scoped, tag = 'scoped memory for tpu_custom_call.1']
    #allocation5 [shape = 'u8[32768]{0}', space=vmem, size = 0x8000, scoped, tag = 'input window, operand 1, single buffered']
    #allocation6 [shape = 's32[1]{0}', space=sflag, size = 0x4, scoped, tag = 'scoped memory for tpu_custom_call.1']
    #allocation7 [shape = 'u8[32768]{0}', space=vmem, size = 0x8000, scoped, tag = 'input window, operand 5, single buffered']
    #allocation8 [shape = 'u8[16384]{0}', space=vmem, size = 0x4000, scoped, tag = 'output window, operand 0, single buffered']
    %12 = vsyncpa [#allocation3], 0
    %13 = vsyncpa [#allocation6], 0
    %14 = vsyncpa [#allocation4], 0
    // Predicated region
    $region2: #{tpu_custom_call.1} parent=1 // pred_check
      _
    $region3: #{tpu_custom_call.1} parent=1 // pred_check_branch
      %16 = sbr.rel (0) target = $region5
    $region4: #{tpu_custom_call.1} parent=1 // pred_region
      %18 = vsyncadd [#allocation3], 0
      %s19 = sshll.u32 %s0, 4
      %s20 = int_to_ptr.hbm [resolvable:$true] %s19
      %s21 = sshll.u32 [#allocation2], 4
      %s22 = int_to_ptr.vmem [resolvable:$true] %s21
      %27 = dma.hbm_to_vmem [thread:$0]  %s20, 256, %s22, [#allocation3], 64, 64, 4
    $region5: #{tpu_custom_call.1} parent=1 // pred_fallthru
      _
    // Predicated region
    $region6: #{tpu_custom_call.1} parent=1 // pred_check
      _
    $region7: #{tpu_custom_call.1} parent=1 // pred_check_branch
      %29 = sbr.rel (0) target = $region9
    $region8: #{tpu_custom_call.1} parent=1 // pred_region
      %31 = vsyncadd [#allocation6], 0
      %s32 = sshll.u32 %s1, 4
      %s33 = int_to_ptr.hbm [resolvable:$true] %s32
      %s34 = sshll.u32 [#allocation5], 4
      %s35 = int_to_ptr.vmem [resolvable:$true] %s34
      %40 = dma.hbm_to_vmem [thread:$0]  %s33, 1024, %s35, [#allocation6], 64, 64, 4
    $region9: #{tpu_custom_call.1} parent=1 // pred_fallthru
      _
    // Predicated region
    $region10: #{tpu_custom_call.1} parent=1 // pred_check
      _
    $region11: #{tpu_custom_call.1} parent=1 // pred_check_branch
      %42 = sbr.rel (0) target = $region13
    $region12: #{tpu_custom_call.1} parent=1 // pred_region
      _
    $region13: #{tpu_custom_call.1} parent=1 // pred_fallthru
      _
    // Predicated region
    $region14: #{tpu_custom_call.1} parent=1 // pred_check
      _
    $region15: #{tpu_custom_call.1} parent=1 // pred_check_branch
      %44 = sbr.rel (0) target = $region17
    $region16: #{tpu_custom_call.1} parent=1 // pred_region
      _
    $region17: #{tpu_custom_call.1} parent=1 // pred_fallthru
      _
    // Predicated region
    $region18: #{tpu_custom_call.1} parent=1 // pred_check
      _
    $region19: #{tpu_custom_call.1} parent=1 // pred_check_branch
      %46 = sbr.rel (0) target = $region21
    $region20: #{tpu_custom_call.1} parent=1 // pred_region
      _
    $region21: #{tpu_custom_call.1} parent=1 // pred_fallthru
      _
    // Predicated region
    $region22: #{tpu_custom_call.1} parent=1 // pred_check
      _
    $region23: #{tpu_custom_call.1} parent=1 // pred_check_branch
      %48 = sbr.rel (0) target = $region25
    $region24: #{tpu_custom_call.1} parent=1 // pred_region
      %50 = vsyncadd [#allocation6], 0
      %s51 = sshll.u32 %s5, 4
      %s52 = int_to_ptr.hbm [resolvable:$true] %s51
      %s53 = sshll.u32 [#allocation7], 4
      %s54 = int_to_ptr.vmem [resolvable:$true] %s53
      %59 = dma.hbm_to_vmem [thread:$0]  %s52, 1024, %s54, [#allocation6], 64, 64, 4
    $region25: #{tpu_custom_call.1} parent=1 // pred_fallthru
      _
    // Predicated region
    $region26: #{tpu_custom_call.1} parent=1 // pred_check
      _
    $region27: #{tpu_custom_call.1} parent=1 // pred_check_branch
      %61 = sbr.rel (0) target = $region29
    $region28: #{tpu_custom_call.1} parent=1 // pred_region
      _
    $region29: #{tpu_custom_call.1} parent=1 // pred_fallthru
      _
    // Predicated region
    $region30: #{tpu_custom_call.1} parent=1 // pred_check
      _
    $region31: #{tpu_custom_call.1} parent=1 // pred_check_branch
      %63 = sbr.rel (0) target = $region33
    $region32: #{tpu_custom_call.1} parent=1 // pred_region
      %65 = dma.done [#allocation3], 256
    $region33: #{tpu_custom_call.1} parent=1 // pred_fallthru
      _
    // Predicated region
    $region34: #{tpu_custom_call.1} parent=1 // pred_check
      _
    $region35: #{tpu_custom_call.1} parent=1 // pred_check_branch
      %67 = sbr.rel (0) target = $region37
    $region36: #{tpu_custom_call.1} parent=1 // pred_region
      %69 = dma.done [#allocation6], 1024
    $region37: #{tpu_custom_call.1} parent=1 // pred_fallthru
      _
    // Predicated region
    $region38: #{tpu_custom_call.1} parent=1 // pred_check
      _
    $region39: #{tpu_custom_call.1} parent=1 // pred_check_branch
      %71 = sbr.rel (0) target = $region41
    $region40: #{tpu_custom_call.1} parent=1 // pred_region
      %73 = dma.done [#allocation6], 1024
    $region41: #{tpu_custom_call.1} parent=1 // pred_fallthru
      _
    %v74 = vld [vmem:[#allocation2] sm:$0xf]
    %v75 = vld [vmem:[#allocation2 + $0x4] sm:$0xf]
    %v76 = vld [vmem:[#allocation2 + $0x8] sm:$0xf]
    %v77 = vld [vmem:[#allocation2 + $0xc] sm:$0xf]
    %v78 = vld [vmem:[#allocation5] sm:$0xf]
    %v79 = vld [vmem:[#allocation5 + $0x4] sm:$0xf]
    %v80 = vld [vmem:[#allocation5 + $0x8] sm:$0xf]
    %v81 = vld [vmem:[#allocation5 + $0xc] sm:$0xf]
    %v82 = vld [vmem:[#allocation5 + $0x10] sm:$0xf]
    %v83 = vld [vmem:[#allocation5 + $0x14] sm:$0xf]
    %v84 = vld [vmem:[#allocation5 + $0x18] sm:$0xf]
    %v85 = vld [vmem:[#allocation5 + $0x1c] sm:$0xf]
    %v86 = vld [vmem:[#allocation5 + $0x20] sm:$0xf]
    %v87 = vld [vmem:[#allocation5 + $0x24] sm:$0xf]
    %v88 = vld [vmem:[#allocation5 + $0x28] sm:$0xf]
    %v89 = vld [vmem:[#allocation5 + $0x2c] sm:$0xf]
    %v90 = vld [vmem:[#allocation5 + $0x30] sm:$0xf]
    %v91 = vld [vmem:[#allocation5 + $0x34] sm:$0xf]
    %v92 = vld [vmem:[#allocation5 + $0x38] sm:$0xf]
    %v93 = vld [vmem:[#allocation5 + $0x3c] sm:$0xf]
    %v94 = vld [vmem:[%s2] sm:$0x1]
    %v96 = vperm.slane %v94, 0
    %v102 = vunpack.c.l.b16 %v74
    %v103 = vunpack.c.l.b16 %v75
    %v104 = vunpack.c.l.b16 %v76
    %v105 = vunpack.c.l.b16 %v77
    %v106 = vpack.c.b16 %v103, %v102
    %v107 = vpack.c.b16 %v105, %v104
    %v126 = vunpack.c.l.b16 %v78
    %v127 = vunpack.c.l.b16 %v79
    %v128 = vunpack.c.l.b16 %v80
    %v129 = vunpack.c.l.b16 %v81
    %v130 = vunpack.c.l.b16 %v82
    %v131 = vunpack.c.l.b16 %v83
    %v132 = vunpack.c.l.b16 %v84
    %v133 = vunpack.c.l.b16 %v85
    %v134 = vunpack.c.l.b16 %v86
    %v135 = vunpack.c.l.b16 %v87
    %v136 = vunpack.c.l.b16 %v88
    %v137 = vunpack.c.l.b16 %v89
    %v138 = vunpack.c.l.b16 %v90
    %v139 = vunpack.c.l.b16 %v91
    %v140 = vunpack.c.l.b16 %v92
    %v141 = vunpack.c.l.b16 %v93
    %v142 = vpack.c.b16 %v127, %v126
    %v143 = vpack.c.b16 %v129, %v128
    %v144 = vpack.c.b16 %v131, %v130
    %v145 = vpack.c.b16 %v133, %v132
    %v146 = vpack.c.b16 %v135, %v134
    %v147 = vpack.c.b16 %v137, %v136
    %v148 = vpack.c.b16 %v139, %v138
    %v149 = vpack.c.b16 %v141, %v140
    %158 = vmatpush.bf16.msra.mxu0 %v149
    %159 = vmatpush.bf16.msra.mxu0 %v148
    %160 = vmatpush.bf16.msra.mxu0 %v147
    %161 = vmatpush.bf16.msra.mxu0 %v146
    %162 = vmatpush.bf16.msra.mxu0 %v145
    %163 = vmatpush.bf16.msra.mxu0 %v144
    %164 = vmatpush.bf16.msra.mxu0 %v143
    %165 = vmatpush.bf16.msra.mxu0 %v142
    %166 = vmatmul.bf16.gmra.mxu0 %v106
    %v167 = vpop.f32.mrf.mxu0
    %v168 = vadd.f32 %v96, %v167
    %v169 = vpop.f32.mrf.mxu0
    %v170 = vadd.f32 %v96, %v169
    %171 = vmatmul.bf16.gmra.mxu0 %v107
    %v172 = vpop.f32.mrf.mxu0
    %v173 = vadd.f32 %v96, %v172
    %v174 = vpop.f32.mrf.mxu0
    %v175 = vadd.f32 %v96, %v174
    %176 = vdwg.mxu0
    %v177 = vadd.f32 %v168, %v170
    %v178 = vadd.f32 %v177, %v173
    %v179 = vadd.f32 %v178, %v175
    %v180 = vrot.slane %v179, 4
    %v181 = vadd.f32 %v179, %v180
    %v182 = vrot.slane %v181, 2
    %v183 = vadd.f32 %v181, %v182
    %v184 = vrot.slane %v183, 1
    %v185 = vadd.f32 %v183, %v184
    %v186 = vmul.f32 %v168, %v168
    %v187 = vmul.f32 %v170, %v170
    %v188 = vmul.f32 %v173, %v173
    %v189 = vmul.f32 %v175, %v175
    %v190 = vadd.f32 %v186, %v187
    %v191 = vadd.f32 %v190, %v188
    %v192 = vadd.f32 %v191, %v189
    %v193 = vrot.slane %v192, 4
    %v194 = vadd.f32 %v192, %v193
    %v195 = vrot.slane %v194, 2
    %v196 = vadd.f32 %v194, %v195
    %v197 = vrot.slane %v196, 1
    %v198 = vadd.f32 %v196, %v197
    %v199 = vmul.f32 %v94, 14.0
    %v200 = vsub.f32 %v185, %v199
    %v201 = vmul.f32 %v199, %v94
    %v202 = vsub.f32 %v198, %v201
    %v203 = vmul.f32 %v200, 0.055555556
    %v204 = vmul.f32 %v202, 0.055555556
    %v205 = vmul.f32 %v203, %v203
    %v206 = vsub.f32 %v204, %v205
    %v207 = vmax.f32 %v206, 0.0
    %v208 = vld [vmem:[%s3] sm:$0x1]
    %v209 = vadd.f32 %v207, 1e-05
    %v210 = vrsqrt.pop %v209
    %v211 = vmul.f32 %v210, %v209
    %v212 = vmul.f32 %v211, %v210
    %v213 = vmul.f32 0.5, %v212
    %v214 = vsub.f32 1.5, %v213
    %v215 = vmul.f32 %v210, %v214
    %vm216 = vweird.f32 %v209
    %vm217 = vweird.f32 %v210
    %vm218 = vmor %vm216, %vm217
    %v219 = vsel %vm218, %v210, %v215
    %v220 = vmul.f32 %v208, %v219
    %v221 = vld [vmem:[%s4] sm:$0x1]
    %v222 = vmul.f32 %v203, %v220
    %v223 = vsub.f32 %v221, %v222
    %v225 = vperm.slane %v220, 0
    %v227 = vmul.f32 %v168, %v225
    %v228 = vmul.f32 %v170, %v225
    %v229 = vmul.f32 %v173, %v225
    %v230 = vmul.f32 %v175, %v225
    %v232 = vperm.slane %v223, 0
    %v234 = vadd.f32 %v227, %v232
    %v235 = vadd.f32 %v228, %v232
    %v236 = vadd.f32 %v229, %v232
    %v237 = vadd.f32 %v230, %v232
    %v238 = vmax.f32 %v234, 0.0
    %v239 = vmax.f32 %v235, 0.0
    %v240 = vmax.f32 %v236, 0.0
    %v241 = vmax.f32 %v237, 0.0
    %v242 = vpack.c.bf16 %v239, %v238
    %v243 = vpack.c.bf16 %v241, %v240
    %v244 = vld [vmem:[#allocation7] sm:$0xf]
    %v245 = vld [vmem:[#allocation7 + $0x4] sm:$0xf]
    %v246 = vld [vmem:[#allocation7 + $0x8] sm:$0xf]
    %v247 = vld [vmem:[#allocation7 + $0xc] sm:$0xf]
    %v248 = vld [vmem:[#allocation7 + $0x10] sm:$0xf]
    %v249 = vld [vmem:[#allocation7 + $0x14] sm:$0xf]
    %v250 = vld [vmem:[#allocation7 + $0x18] sm:$0xf]
    %v251 = vld [vmem:[#allocation7 + $0x1c] sm:$0xf]
    %v252 = vld [vmem:[#allocation7 + $0x20] sm:$0xf]
    %v253 = vld [vmem:[#allocation7 + $0x24] sm:$0xf]
    %v254 = vld [vmem:[#allocation7 + $0x28] sm:$0xf]
    %v255 = vld [vmem:[#allocation7 + $0x2c] sm:$0xf]
    %v256 = vld [vmem:[#allocation7 + $0x30] sm:$0xf]
    %v257 = vld [vmem:[#allocation7 + $0x34] sm:$0xf]
    %v258 = vld [vmem:[#allocation7 + $0x38] sm:$0xf]
    %v259 = vld [vmem:[#allocation7 + $0x3c] sm:$0xf]
    %v260 = vld [vmem:[%s6] sm:$0x1]
    %v262 = vperm.slane %v260, 0
    %v280 = vunpack.c.l.b16 %v244
    %v281 = vunpack.c.l.b16 %v245
    %v282 = vunpack.c.l.b16 %v246
    %v283 = vunpack.c.l.b16 %v247
    %v284 = vunpack.c.l.b16 %v248
    %v285 = vunpack.c.l.b16 %v249
    %v286 = vunpack.c.l.b16 %v250
    %v287 = vunpack.c.l.b16 %v251
    %v288 = vunpack.c.l.b16 %v252
    %v289 = vunpack.c.l.b16 %v253
    %v290 = vunpack.c.l.b16 %v254
    %v291 = vunpack.c.l.b16 %v255
    %v292 = vunpack.c.l.b16 %v256
    %v293 = vunpack.c.l.b16 %v257
    %v294 = vunpack.c.l.b16 %v258
    %v295 = vunpack.c.l.b16 %v259
    %v296 = vpack.c.b16 %v281, %v280
    %v297 = vpack.c.b16 %v283, %v282
    %v298 = vpack.c.b16 %v285, %v284
    %v299 = vpack.c.b16 %v287, %v286
    %v300 = vpack.c.b16 %v289, %v288
    %v301 = vpack.c.b16 %v291, %v290
    %v302 = vpack.c.b16 %v293, %v292
    %v303 = vpack.c.b16 %v295, %v294
    %312 = vmatpush.bf16.msra.mxu0 %v303
    %313 = vmatpush.bf16.msra.mxu0 %v302
    %314 = vmatpush.bf16.msra.mxu0 %v301
    %315 = vmatpush.bf16.msra.mxu0 %v300
    %316 = vmatpush.bf16.msra.mxu0 %v299
    %317 = vmatpush.bf16.msra.mxu0 %v298
    %318 = vmatpush.bf16.msra.mxu0 %v297
    %319 = vmatpush.bf16.msra.mxu0 %v296
    %320 = vmatmul.bf16.gmra.mxu0 %v242
    %v321 = vpop.f32.mrf.mxu0
    %v322 = vadd.f32 %v262, %v321
    %v323 = vpop.f32.mrf.mxu0
    %v324 = vadd.f32 %v262, %v323
    %325 = vmatmul.bf16.gmra.mxu0 %v243
    %v326 = vpop.f32.mrf.mxu0
    %v327 = vadd.f32 %v262, %v326
    %v328 = vpop.f32.mrf.mxu0
    %v329 = vadd.f32 %v262, %v328
    %330 = vdwg.mxu0
    %v331 = vmul.f32 %v322, %v322
    %v332 = vmul.f32 %v324, %v324
    %v333 = vmul.f32 %v327, %v327
    %v334 = vmul.f32 %v329, %v329
    %335 = vadd.xlane.f32.xlu0 %v331
    %v336 = vpop.xlane.xlu0 %335
    %337 = vadd.xlane.f32.xlu0 %v332
    %v338 = vpop.xlane.xlu0 %337
    %339 = vadd.xlane.f32.xlu0 %v333
    %v340 = vpop.xlane.xlu0 %339
    %341 = vadd.xlane.f32.xlu0 %v334
    %v342 = vpop.xlane.xlu0 %341
    %v343 = vmax.f32 %v336, 1e-24
    %v344 = vmax.f32 %v338, 1e-24
    %v345 = vmax.f32 %v340, 1e-24
    %v346 = vmax.f32 %v342, 1e-24
    %v347 = vrsqrt.pop %v343
    %v348 = vmul.f32 %v347, %v343
    %v349 = vmul.f32 %v348, %v347
    %v350 = vmul.f32 0.5, %v349
    %v351 = vsub.f32 1.5, %v350
    %v352 = vmul.f32 %v347, %v351
    %vm353 = vweird.f32 %v343
    %vm354 = vweird.f32 %v347
    %vm355 = vmor %vm353, %vm354
    %v356 = vsel %vm355, %v347, %v352
    %v357 = vrsqrt.pop %v344
    %v358 = vmul.f32 %v357, %v344
    %v359 = vmul.f32 %v358, %v357
    %v360 = vmul.f32 0.5, %v359
    %v361 = vsub.f32 1.5, %v360
    %v362 = vmul.f32 %v357, %v361
    %vm363 = vweird.f32 %v344
    %vm364 = vweird.f32 %v357
    %vm365 = vmor %vm363, %vm364
    %v366 = vsel %vm365, %v357, %v362
    %v367 = vrsqrt.pop %v345
    %v368 = vmul.f32 %v367, %v345
    %v369 = vmul.f32 %v368, %v367
    %v370 = vmul.f32 0.5, %v369
    %v371 = vsub.f32 1.5, %v370
    %v372 = vmul.f32 %v367, %v371
    %vm373 = vweird.f32 %v345
    %vm374 = vweird.f32 %v367
    %vm375 = vmor %vm373, %vm374
    %v376 = vsel %vm375, %v367, %v372
    %v377 = vrsqrt.pop %v346
    %v378 = vmul.f32 %v377, %v346
    %v379 = vmul.f32 %v378, %v377
    %v380 = vmul.f32 0.5, %v379
    %v381 = vsub.f32 1.5, %v380
    %v382 = vmul.f32 %v377, %v381
    %vm383 = vweird.f32 %v346
    %vm384 = vweird.f32 %v377
    %vm385 = vmor %vm383, %vm384
    %v386 = vsel %vm385, %v377, %v382
    %v387 = vmul.f32 %v322, %v356
    %v388 = vmul.f32 %v324, %v366
    %v389 = vmul.f32 %v327, %v376
    %v390 = vmul.f32 %v329, %v386
    %391 = vst [vmem:[#allocation8] sm:$0xff] %v387
    %392 = vst [vmem:[#allocation8 + $0x8] sm:$0xff] %v388
    %393 = vst [vmem:[#allocation8 + $0x10] sm:$0xff] %v389
    %394 = vst [vmem:[#allocation8 + $0x18] sm:$0xff] %v390
    // Predicated region
    $region42: #{tpu_custom_call.1} parent=1 // pred_check
      _
    $region43: #{tpu_custom_call.1} parent=1 // pred_check_branch
      %396 = sbr.rel (0) target = $region45
    $region44: #{tpu_custom_call.1} parent=1 // pred_region
      %398 = vsyncadd [#allocation4], 0
      %s399 = sshll.u32 [#allocation8], 4
      %s400 = int_to_ptr.vmem [resolvable:$true] %s399
      %s401 = sshll.u32 %s7, 4
      %s402 = int_to_ptr.hbm [resolvable:$true] %s401
      %407 = dma.vmem_to_hbm [thread:$0]  %s400, 512, %s402, [#allocation4], 128, 128, 8
    $region45: #{tpu_custom_call.1} parent=1 // pred_fallthru
      _
    // Predicated region
    $region46: #{tpu_custom_call.1} parent=1 // pred_check
      _
    $region47: #{tpu_custom_call.1} parent=1 // pred_check_branch
      %409 = sbr.rel (0) target = $region49
    $region48: #{tpu_custom_call.1} parent=1 // pred_region
      %411 = dma.done [#allocation4], 512
    $region49: #{tpu_custom_call.1} parent=1 // pred_fallthru
      _
    %412 = vsyncpa [#allocation3], 1
    %413 = vsyncpa [#allocation6], 1
    %414 = vsyncpa [#allocation4], 1

</llo_original>
